<compile_context>
chip_gen: v6e
topology: v6e:2x2x1
jax: 0.10.0
libtpu: 0.0.40
codegen_flags: <defaults>
</compile_context>

<pallas_src>
import jax
import jax.numpy as jnp
import numpy as np
from jax import lax
from jax.experimental import pallas as pl
from jax.experimental.pallas import tpu as pltpu

_INV_SQRT2 = 0.7071067811865476
_MIB = 1024 * 1024


def _round_up(a, b):
    return (a + b - 1) // b * b


def _erf_approx(x):
    # Abramowitz & Stegun 7.1.26, |error| <= 1.5e-7 -- well below f32 matmul
    # rounding.  Uses only ops with guaranteed Mosaic lowerings.
    a1, a2, a3, a4, a5 = (0.254829592, -0.284496736, 1.421413741,
                          -1.453152027, 1.061405429)
    p = 0.3275911
    ax = jnp.abs(x)
    t = 1.0 / (1.0 + p * ax)
    poly = ((((a5 * t + a4) * t + a3) * t + a2) * t + a1) * t
    y = 1.0 - poly * jnp.exp(-ax * ax)
    return jnp.where(x < 0, -y, y)


def _gelu_exact(h):
    # torch.nn.GELU() default: 0.5 * x * (1 + erf(x / sqrt(2)))
    return 0.5 * h * (1.0 + _erf_approx(h * _INV_SQRT2))


# ---------------------------------------------------------------------------
# Kernels
# ---------------------------------------------------------------------------

def _mlp_kernel(x_ref, w1_ref, b1_ref, w2_ref, b2_ref, o_ref):
    # x: (tm, C)  w1: (C, H)  b1: (1, H)  w2: (H, Co)  b2: (1, Co)  o: (tm, Co)
    h = jnp.dot(x_ref[...], w1_ref[...], preferred_element_type=jnp.float32)
    h = _gelu_exact(h + b1_ref[...])
    out = jnp.dot(h.astype(w2_ref.dtype), w2_ref[...],
                  preferred_element_type=jnp.float32)
    o_ref[...] = (out + b2_ref[...]).astype(o_ref.dtype)


def _mlp_kernel_htiled(x_ref, w1_ref, b1_ref, w2_ref, b2_ref, o_ref, acc_ref):
    # Grid = (row tiles, H tiles); H is the last, "arbitrary" reduction axis.
    j = pl.program_id(1)

    @pl.when(j == 0)
    def _():
        acc_ref[...] = jnp.zeros_like(acc_ref)

    h = jnp.dot(x_ref[...], w1_ref[...], preferred_element_type=jnp.float32)
    h = _gelu_exact(h + b1_ref[...])
    acc_ref[...] += jnp.dot(h.astype(w2_ref.dtype), w2_ref[...],
                            preferred_element_type=jnp.float32)

    @pl.when(j == pl.num_programs(1) - 1)
    def _():
        o_ref[...] = (acc_ref[...] + b2_ref[...]).astype(o_ref.dtype)


# ---------------------------------------------------------------------------
# Wrapper helpers
# ---------------------------------------------------------------------------

def _vmem_capacity_bytes():
    try:
        return int(pltpu.get_tpu_info().vmem_capacity_bytes)
    except Exception:
        return 64 * _MIB  # conservative (v7x per-TC VMEM)


def _choose_row_tile(M, tm_max):
    """Return (tm, Mp). Prefers: no padding, MXU-friendly tiles, >=2 tiles."""
    if M <= tm_max:
        # One full-extent tile needs no (8,128) alignment; split in two when
        # possible so both v7x TensorCores get a tile.
        if M >= 256 and M % 16 == 0:
            return M // 2, M
        return M, M
    # Largest multiple of 128 <= tm_max that divides M (lane/MXU friendly).
    t = tm_max - tm_max % 128
    while t >= 128:
        if M % t == 0:
            return t, M
        t -= 128
    # Any multiple of 8 that divides M.
    t = tm_max - tm_max % 8
    while t >= 8:
        if M % t == 0:
            return t, M
        t -= 8
    # Fall back to padding (rare).
    t = max(tm_max - tm_max % 128, 128)
    return t, _round_up(M, t)


def _choose_h_tile(C, Co, H, itemsize, tile_budget_bytes):
    """Largest lane-aligned th dividing H whose double-buffered tiles fit."""
    for step in (256, 128):
        t = min(H, 2048)
        t -= t % step
        while t >= step:
            if H % t == 0 and 2 * (C + Co) * t * itemsize <= tile_budget_bytes:
                return t
            t -= step
    return 128 if H % 128 == 0 else H


# ---------------------------------------------------------------------------
# Public entry point
# ---------------------------------------------------------------------------

def mlp_pallas(x, w1, b1, w2, b2, *, compute_dtype=jnp.bfloat16, tm_max=512,
               max_resident_weight_bytes=24 * _MIB, h_tile=None):
    """Fused MLP forward.

    x: (..., C), w1: (C, H), b1: (H,), w2: (H, Co), b2: (Co,).
    Matmuls run in `compute_dtype` on the MXU with f32 accumulation; GELU and
    bias adds are f32.  Dropout (p=0.0 / eval) is the identity and omitted.
    """
    orig_shape = x.shape
    out_dtype = x.dtype
    C = orig_shape[-1]
    H = w1.shape[1]
    Co = w2.shape[1]
    assert w1.shape[0] == C and w2.shape[0] == H
    assert b1.shape == (H,) and b2.shape == (Co,)

    # ---- wrapper-side zero padding so every lane dim is a multiple of 128 --
    # (exact for this op: zero inputs -> GELU(0)=0 -> zero contributions).
    Cp, Hp, Cop = _round_up(C, 128), _round_up(H, 128), _round_up(Co, 128)

    xf = x.reshape(-1, C).astype(compute_dtype)
    if Cp != C:
        xf = jnp.pad(xf, ((0, 0), (0, Cp - C)))
    w1p = w1.astype(compute_dtype)
    w2p = w2.astype(compute_dtype)
    if Cp != C or Hp != H:
        w1p = jnp.pad(w1p, ((0, Cp - C), (0, Hp - H)))
    if Hp != H or Cop != Co:
        w2p = jnp.pad(w2p, ((0, Hp - H), (0, Cop - Co)))
    b1p = jnp.pad(b1.astype(jnp.float32), (0, Hp - H)).reshape(1, Hp)
    b2p = jnp.pad(b2.astype(jnp.float32), (0, Cop - Co)).reshape(1, Cop)

    M = xf.shape[0]
    tm, Mp = _choose_row_tile(M, tm_max)
    if Mp != M:
        xf = jnp.pad(xf, ((0, Mp - M), (0, 0)))
    n_row_tiles = Mp // tm

    csz = jnp.dtype(compute_dtype).itemsize
    osz = jnp.dtype(out_dtype).itemsize
    weight_bytes = (Cp * Hp + Hp * Cop) * csz
    use_h_tiling = (h_tile is not None) or (weight_bytes > max_resident_weight_bytes)

    flops = 2 * Mp * Cp * Hp + 2 * Mp * Hp * Cop
    cost = pl.CostEstimate(
        flops=flops, transcendentals=Mp * Hp,
        bytes_accessed=csz * (Mp * Cp + Cp * Hp + Hp * Cop)
        + 4 * (Hp + Cop) + osz * Mp * Cop)

    vmem_cap = _vmem_capacity_bytes()

    def _const_spec(shape, single_buffer):
        zeros = (0,) * len(shape)
        index_map = lambda *_: zeros
        if single_buffer:
            return pl.BlockSpec(shape, index_map, pipeline_mode=pl.Buffered(1))
        return pl.BlockSpec(shape, index_map)

    def _run(single_buffer_weights):
        if not use_h_tiling:
            grid = (n_row_tiles,)
            in_specs = [
                pl.BlockSpec((tm, Cp), lambda i: (i, 0)),          # x row tile
                _const_spec((Cp, Hp), single_buffer_weights),      # W1 (resident)
                _const_spec((1, Hp), single_buffer_weights),       # b1
                _const_spec((Hp, Cop), single_buffer_weights),     # W2 (resident)
                _const_spec((1, Cop), single_buffer_weights),      # b2
            ]
            out_specs = pl.BlockSpec((tm, Cop), lambda i: (i, 0))
            scratch = []
            kernel = _mlp_kernel
            semantics = ("parallel",)
            wfactor = 1 if single_buffer_weights else 2
            need = (wfactor * weight_bytes              # W1 + W2
                    + 2 * tm * Cp * csz                 # x tiles (double-buffered)
                    + 2 * tm * Cop * osz                # out tiles
                    + tm * Hp * 4                       # hidden activation slab (f32)
                    + 2 * (Hp + Cop) * 4                # biases
                    + 4 * _MIB)                         # headroom
        else:
            th = h_tile if h_tile is not None else _choose_h_tile(
                Cp, Cop, Hp, csz, tile_budget_bytes=16 * _MIB)
            assert Hp % th == 0, (Hp, th)
            n_h = Hp // th
            grid = (n_row_tiles, n_h)
            in_specs = [
                pl.BlockSpec((tm, Cp), lambda i, j: (i, 0)),    # x (reused over j)
                # TODO(synk): bump W1/W2 tiles to pipeline_mode=pl.Buffered(3)
                # if weight-tile DMA is exposed on v7x (wall vs compute check).
                pl.BlockSpec((Cp, th), lambda i, j: (0, j)),    # W1 h-tile
                pl.BlockSpec((1, th), lambda i, j: (0, j)),     # b1 h-tile
                pl.BlockSpec((th, Cop), lambda i, j: (j, 0)),   # W2 h-tile
                _const_spec((1, Cop), single_buffer_weights),   # b2 (resident)
            ]
            out_specs = pl.BlockSpec((tm, Cop), lambda i, j: (i, 0))
            scratch = [pltpu.VMEM((tm, Cop), jnp.float32)]
            kernel = _mlp_kernel_htiled
            semantics = ("parallel", "arbitrary")
            need = (2 * (Cp * th + th * Cop) * csz      # streamed weight tiles
                    + 2 * tm * Cp * csz + 2 * tm * Cop * osz
                    + tm * Cop * 4                      # f32 accumulator scratch
                    + tm * th * 4                       # hidden tile slab (f32)
                    + 2 * (th + Cop) * 4
                    + 4 * _MIB)

        vmem_limit = int(max(32 * _MIB, min(need, vmem_cap)))

        return pl.pallas_call(
            kernel,
            out_shape=jax.ShapeDtypeStruct((Mp, Cop), out_dtype),
            grid_spec=pltpu.PrefetchScalarGridSpec(
                num_scalar_prefetch=0,
                grid=grid,
                in_specs=in_specs,
                out_specs=out_specs,
                scratch_shapes=scratch,
            ),
            compiler_params=pltpu.CompilerParams(
                dimension_semantics=semantics,
                vmem_limit_bytes=vmem_limit),
            cost_estimate=cost,
        )(xf, w1p, b1p, w2p, b2p)

    try:
        out = _run(single_buffer_weights=True)
    except Exception:
        # pl.Buffered(1) single-buffering unsupported on this jax/backend
        # combination -> fall back to default double buffering.
        out = _run(single_buffer_weights=False)

    out = out[:M, :Co]
    return out.reshape(*orig_shape[:-1], Co)


def mlp_ref(x, w1, b1, w2, b2):
    """Pure-JAX reference (highest-precision matmuls), identical semantics."""
    h = jnp.dot(x, w1, precision=lax.Precision.HIGHEST) + b1
    h = 0.5 * h * (1.0 + lax.erf(h * _INV_SQRT2))
    return jnp.dot(h, w2, precision=lax.Precision.HIGHEST) + b2


if __name__ == "__main__":
    def make_inputs(key, B, S, C, H, Co):
        k_x, k_w1, k_b1, k_w2, k_b2 = jax.random.split(key, 5)
        x = jax.random.normal(k_x, (B, S, C), dtype=jnp.float32)
        w1 = jax.random.normal(k_w1, (C, H), dtype=jnp.float32) * 0.1
        b1 = jax.random.normal(k_b1, (H,), dtype=jnp.float32) * 0.1
        w2 = jax.random.normal(k_w2, (H, Co), dtype=jnp.float32) * 0.1
        b2 = jax.random.normal(k_b2, (Co,), dtype=jnp.float32) * 0.1
        return x, w1, b1, w2, b2

    key = jax.random.PRNGKey(0)

    # 1) Default path: bf16 MXU matmuls, fully resident weights.
    #    Mlp(in_features=32, hidden_features=128) on x of shape (2, 16, 32).
    B, S, C, H = 2, 16, 32, 128
    x, w1, b1, w2, b2 = make_inputs(key, B, S, C, H, C)
    out = jax.block_until_ready(mlp_pallas(x, w1, b1, w2, b2))
    assert out.shape == (B, S, C), out.shape
    ref = np.asarray(jax.block_until_ready(mlp_ref(x, w1, b1, w2, b2)))
    got = np.asarray(out)
    assert np.allclose(got, ref, atol=5e-2, rtol=5e-2), (
        "bf16 path mismatch: max abs err = %e" % np.max(np.abs(got - ref)))

    # 2) f32 compute path: tight-tolerance correctness check.
    out32 = jax.block_until_ready(
        mlp_pallas(x, w1, b1, w2, b2, compute_dtype=jnp.float32))
    got32 = np.asarray(out32)
    assert np.allclose(got32, ref, atol=1e-3, rtol=1e-3), (
        "f32 path mismatch: max abs err = %e" % np.max(np.abs(got32 - ref)))

    # 3) Forced hidden-dim-tiled path (th=128 over H=256), with an unaligned
    #    token count and Co, exercising wrapper padding + the VMEM accumulator.
    B2, S2, C2, H2, Co2 = 2, 13, 64, 256, 48
    x2, w12, b12, w22, b22 = make_inputs(jax.random.PRNGKey(1), B2, S2, C2, H2, Co2)
    out_h = jax.block_until_ready(mlp_pallas(x2, w12, b12, w22, b22, h_tile=128))
    assert out_h.shape == (B2, S2, Co2), out_h.shape
    ref2 = np.asarray(jax.block_until_ready(mlp_ref(x2, w12, b12, w22, b22)))
    got_h = np.asarray(out_h)
    assert np.allclose(got_h, ref2, atol=5e-2, rtol=5e-2), (
        "h-tiled path mismatch: max abs err = %e" % np.max(np.abs(got_h - ref2)))

    print("KERNEL_OK")
</pallas_src>

<mosaic_0001>
module attributes {stable_mosaic.version = 11 : i64} {
  func.func @_mlp_kernel(%arg0: i32, %arg1: memref<32x128xbf16, #tpu.memory_space<vmem>>, %arg2: memref<128x128xbf16, #tpu.memory_space<vmem>>, %arg3: memref<1x128xf32, #tpu.memory_space<vmem>>, %arg4: memref<128x128xbf16, #tpu.memory_space<vmem>>, %arg5: memref<1x128xf32, #tpu.memory_space<vmem>>, %arg6: memref<32x128xf32, #tpu.memory_space<vmem>>) attributes {dimension_semantics = [#tpu.dimension_semantics<parallel>], iteration_bounds = array<i64: 1>, scalar_prefetch = 0 : i64, scratch_operands = 0 : i64, tpu.core_type = #tpu.core_type<tc>, window_params = [{transform_indices = @transform_0, window_bounds = array<i64: 32, 128>}, {pipeline_mode = #tpu.pipeline_mode<synchronous>, transform_indices = @transform_1, window_bounds = array<i64: 128, 128>}, {pipeline_mode = #tpu.pipeline_mode<synchronous>, transform_indices = @transform_2, window_bounds = array<i64: 1, 128>}, {pipeline_mode = #tpu.pipeline_mode<synchronous>, transform_indices = @transform_3, window_bounds = array<i64: 128, 128>}, {pipeline_mode = #tpu.pipeline_mode<synchronous>, transform_indices = @transform_4, window_bounds = array<i64: 1, 128>}, {transform_indices = @transform_5, window_bounds = array<i64: 32, 128>}]} {
    %c0 = arith.constant 0 : index
    %c0_0 = arith.constant 0 : index
    %0 = vector.load %arg1[%c0, %c0_0] : memref<32x128xbf16, #tpu.memory_space<vmem>>, vector<32x128xbf16>
    %c0_1 = arith.constant 0 : index
    %c0_2 = arith.constant 0 : index
    %1 = vector.load %arg2[%c0_1, %c0_2] : memref<128x128xbf16, #tpu.memory_space<vmem>>, vector<128x128xbf16>
    %cst = arith.constant dense<0.000000e+00> : vector<32x128xf32>
    %2 = tpu.matmul %0, %1, %cst {dimension_numbers = #tpu.dot_dimension_numbers<[1], [0], [0], [1], [0, 0, 1, 1], [], []>} : vector<32x128xbf16>, vector<128x128xbf16>, vector<32x128xf32> -> vector<32x128xf32>
    %c0_3 = arith.constant 0 : index
    %c0_4 = arith.constant 0 : index
    %3 = vector.load %arg3[%c0_3, %c0_4] : memref<1x128xf32, #tpu.memory_space<vmem>>, vector<1x128xf32>
    %4 = vector.broadcast %3 : vector<1x128xf32> to vector<32x128xf32>
    %5 = arith.addf %2, %4 : vector<32x128xf32>
    %cst_5 = arith.constant 5.000000e-01 : f32
    %6 = vector.broadcast %cst_5 : f32 to vector<32x128xf32>
    %7 = arith.mulf %6, %5 : vector<32x128xf32>
    %cst_6 = arith.constant 0.707106769 : f32
    %8 = vector.broadcast %cst_6 : f32 to vector<32x128xf32>
    %9 = arith.mulf %5, %8 : vector<32x128xf32>
    %10 = math.absf %9 : vector<32x128xf32>
    %cst_7 = arith.constant 0.327591091 : f32
    %11 = vector.broadcast %cst_7 : f32 to vector<32x128xf32>
    %12 = arith.mulf %11, %10 : vector<32x128xf32>
    %cst_8 = arith.constant 1.000000e+00 : f32
    %13 = vector.broadcast %cst_8 : f32 to vector<32x128xf32>
    %14 = arith.addf %13, %12 : vector<32x128xf32>
    %cst_9 = arith.constant 1.000000e+00 : f32
    %15 = vector.broadcast %cst_9 : f32 to vector<32x128xf32>
    %16 = arith.divf %15, %14 : vector<32x128xf32>
    %cst_10 = arith.constant 1.06140542 : f32
    %17 = vector.broadcast %cst_10 : f32 to vector<32x128xf32>
    %18 = arith.mulf %17, %16 : vector<32x128xf32>
    %cst_11 = arith.constant -1.45315206 : f32
    %19 = vector.broadcast %cst_11 : f32 to vector<32x128xf32>
    %20 = arith.addf %18, %19 : vector<32x128xf32>
    %21 = arith.mulf %20, %16 : vector<32x128xf32>
    %cst_12 = arith.constant 1.42141378 : f32
    %22 = vector.broadcast %cst_12 : f32 to vector<32x128xf32>
    %23 = arith.addf %21, %22 : vector<32x128xf32>
    %24 = arith.mulf %23, %16 : vector<32x128xf32>
    %cst_13 = arith.constant -0.284496725 : f32
    %25 = vector.broadcast %cst_13 : f32 to vector<32x128xf32>
    %26 = arith.addf %24, %25 : vector<32x128xf32>
    %27 = arith.mulf %26, %16 : vector<32x128xf32>
    %cst_14 = arith.constant 0.254829586 : f32
    %28 = vector.broadcast %cst_14 : f32 to vector<32x128xf32>
    %29 = arith.addf %27, %28 : vector<32x128xf32>
    %30 = arith.mulf %29, %16 : vector<32x128xf32>
    %cst_15 = arith.constant 0.000000e+00 : f32
    %31 = vector.broadcast %cst_15 : f32 to vector<32x128xf32>
    %32 = arith.subf %31, %10 : vector<32x128xf32>
    %33 = arith.mulf %32, %10 : vector<32x128xf32>
    %34 = math.exp %33 : vector<32x128xf32>
    %35 = arith.mulf %30, %34 : vector<32x128xf32>
    %cst_16 = arith.constant 1.000000e+00 : f32
    %36 = vector.broadcast %cst_16 : f32 to vector<32x128xf32>
    %37 = arith.subf %36, %35 : vector<32x128xf32>
    %cst_17 = arith.constant 0.000000e+00 : f32
    %38 = vector.broadcast %cst_17 : f32 to vector<32x128xf32>
    %39 = arith.cmpf olt, %9, %38 : vector<32x128xf32>
    %cst_18 = arith.constant 0.000000e+00 : f32
    %40 = vector.broadcast %cst_18 : f32 to vector<32x128xf32>
    %41 = arith.subf %40, %37 : vector<32x128xf32>
    %42 = arith.select %39, %41, %37 : vector<32x128xi1>, vector<32x128xf32>
    %cst_19 = arith.constant 1.000000e+00 : f32
    %43 = vector.broadcast %cst_19 : f32 to vector<32x128xf32>
    %44 = arith.addf %43, %42 : vector<32x128xf32>
    %45 = arith.mulf %7, %44 : vector<32x128xf32>
    %46 = arith.truncf %45 : vector<32x128xf32> to vector<32x128xbf16>
    %c0_20 = arith.constant 0 : index
    %c0_21 = arith.constant 0 : index
    %47 = vector.load %arg4[%c0_20, %c0_21] : memref<128x128xbf16, #tpu.memory_space<vmem>>, vector<128x128xbf16>
    %cst_22 = arith.constant dense<0.000000e+00> : vector<32x128xf32>
    %48 = tpu.matmul %46, %47, %cst_22 {dimension_numbers = #tpu.dot_dimension_numbers<[1], [0], [0], [1], [0, 0, 1, 1], [], []>} : vector<32x128xbf16>, vector<128x128xbf16>, vector<32x128xf32> -> vector<32x128xf32>
    %c0_23 = arith.constant 0 : index
    %c0_24 = arith.constant 0 : index
    %49 = vector.load %arg5[%c0_23, %c0_24] : memref<1x128xf32, #tpu.memory_space<vmem>>, vector<1x128xf32>
    %50 = vector.broadcast %49 : vector<1x128xf32> to vector<32x128xf32>
    %51 = arith.addf %48, %50 : vector<32x128xf32>
    %c0_25 = arith.constant 0 : index
    %c0_26 = arith.constant 0 : index
    %52 = vector.load %arg6[%c0_25, %c0_26] : memref<32x128xf32, #tpu.memory_space<vmem>>, vector<32x128xf32>
    tpu.vector_store %arg6[%c0_25, %c0_26], %51 {strides = array<i32>} : memref<32x128xf32, #tpu.memory_space<vmem>>, vector<32x128xf32>,
    return
  }
  func.func @transform_0(%arg0: i32) -> (i32, i32) {
    %c0_i32 = arith.constant 0 : i32
    %c0_i32_0 = arith.constant 0 : i32
    return %arg0, %c0_i32 : i32, i32
  }
  func.func @transform_1(%arg0: i32) -> (i32, i32) {
    %c0_i32 = arith.constant 0 : i32
    %c0_i32_0 = arith.constant 0 : i32
    %c0_i32_1 = arith.constant 0 : i32
    return %c0_i32, %c0_i32_0 : i32, i32
  }
  func.func @transform_2(%arg0: i32) -> (i32, i32) {
    %c0_i32 = arith.constant 0 : i32
    %c0_i32_0 = arith.constant 0 : i32
    %c0_i32_1 = arith.constant 0 : i32
    return %c0_i32, %c0_i32_0 : i32, i32
  }
  func.func @transform_3(%arg0: i32) -> (i32, i32) {
    %c0_i32 = arith.constant 0 : i32
    %c0_i32_0 = arith.constant 0 : i32
    %c0_i32_1 = arith.constant 0 : i32
    return %c0_i32, %c0_i32_0 : i32, i32
  }
  func.func @transform_4(%arg0: i32) -> (i32, i32) {
    %c0_i32 = arith.constant 0 : i32
    %c0_i32_0 = arith.constant 0 : i32
    %c0_i32_1 = arith.constant 0 : i32
    return %c0_i32, %c0_i32_0 : i32, i32
  }
  func.func @transform_5(%arg0: i32) -> (i32, i32) {
    %c0_i32 = arith.constant 0 : i32
    %c0_i32_0 = arith.constant 0 : i32
    return %arg0, %c0_i32 : i32, i32
  }
}

module attributes {stable_mosaic.version = 11 : i64} {
  func.func @_mlp_kernel(%arg0: i32, %arg1: memref<32x128xbf16, #tpu.memory_space<vmem>>, %arg2: memref<128x128xbf16, #tpu.memory_space<vmem>>, %arg3: memref<1x128xf32, #tpu.memory_space<vmem>>, %arg4: memref<128x128xbf16, #tpu.memory_space<vmem>>, %arg5: memref<1x128xf32, #tpu.memory_space<vmem>>, %arg6: memref<32x128xf32, #tpu.memory_space<vmem>>) attributes {dimension_semantics = [#tpu.dimension_semantics<parallel>], iteration_bounds = array<i64: 1>, scalar_prefetch = 0 : i64, scratch_operands = 0 : i64, tpu.core_type = #tpu.core_type<tc>, window_params = [{transform_indices = @transform_0, window_bounds = array<i64: 32, 128>}, {pipeline_mode = #tpu.pipeline_mode<synchronous>, transform_indices = @transform_1, window_bounds = array<i64: 128, 128>}, {pipeline_mode = #tpu.pipeline_mode<synchronous>, transform_indices = @transform_2, window_bounds = array<i64: 1, 128>}, {pipeline_mode = #tpu.pipeline_mode<synchronous>, transform_indices = @transform_3, window_bounds = array<i64: 128, 128>}, {pipeline_mode = #tpu.pipeline_mode<synchronous>, transform_indices = @transform_4, window_bounds = array<i64: 1, 128>}, {transform_indices = @transform_5, window_bounds = array<i64: 32, 128>}]} {
    %c0 = arith.constant 0 : index
    %c0_0 = arith.constant 0 : index
    %0 = vector.load %arg1[%c0, %c0_0] : memref<32x128xbf16, #tpu.memory_space<vmem>>, vector<32x128xbf16>
    %c0_1 = arith.constant 0 : index
    %c0_2 = arith.constant 0 : index
    %1 = vector.load %arg2[%c0_1, %c0_2] : memref<128x128xbf16, #tpu.memory_space<vmem>>, vector<128x128xbf16>
    %cst = arith.constant dense<0.000000e+00> : vector<32x128xf32>
    %2 = tpu.matmul %0, %1, %cst {dimension_numbers = #tpu.dot_dimension_numbers<[1], [0], [0], [1], [0, 0, 1, 1], [], []>} : vector<32x128xbf16>, vector<128x128xbf16>, vector<32x128xf32> -> vector<32x128xf32>
    %c0_3 = arith.constant 0 : index
    %c0_4 = arith.constant 0 : index
    %3 = vector.load %arg3[%c0_3, %c0_4] : memref<1x128xf32, #tpu.memory_space<vmem>>, vector<1x128xf32>
    %4 = vector.broadcast %3 : vector<1x128xf32> to vector<32x128xf32>
    %5 = arith.addf %2, %4 : vector<32x128xf32>
    %cst_5 = arith.constant 5.000000e-01 : f32
    %6 = vector.broadcast %cst_5 : f32 to vector<32x128xf32>
    %7 = arith.mulf %6, %5 : vector<32x128xf32>
    %cst_6 = arith.constant 0.707106769 : f32
    %8 = vector.broadcast %cst_6 : f32 to vector<32x128xf32>
    %9 = arith.mulf %5, %8 : vector<32x128xf32>
    %10 = math.absf %9 : vector<32x128xf32>
    %cst_7 = arith.constant 0.327591091 : f32
    %11 = vector.broadcast %cst_7 : f32 to vector<32x128xf32>
    %12 = arith.mulf %11, %10 : vector<32x128xf32>
    %cst_8 = arith.constant 1.000000e+00 : f32
    %13 = vector.broadcast %cst_8 : f32 to vector<32x128xf32>
    %14 = arith.addf %13, %12 : vector<32x128xf32>
    %cst_9 = arith.constant 1.000000e+00 : f32
    %15 = vector.broadcast %cst_9 : f32 to vector<32x128xf32>
    %16 = arith.divf %15, %14 : vector<32x128xf32>
    %cst_10 = arith.constant 1.06140542 : f32
    %17 = vector.broadcast %cst_10 : f32 to vector<32x128xf32>
    %18 = arith.mulf %17, %16 : vector<32x128xf32>
    %cst_11 = arith.constant -1.45315206 : f32
    %19 = vector.broadcast %cst_11 : f32 to vector<32x128xf32>
    %20 = arith.addf %18, %19 : vector<32x128xf32>
    %21 = arith.mulf %20, %16 : vector<32x128xf32>
    %cst_12 = arith.constant 1.42141378 : f32
    %22 = vector.broadcast %cst_12 : f32 to vector<32x128xf32>
    %23 = arith.addf %21, %22 : vector<32x128xf32>
    %24 = arith.mulf %23, %16 : vector<32x128xf32>
    %cst_13 = arith.constant -0.284496725 : f32
    %25 = vector.broadcast %cst_13 : f32 to vector<32x128xf32>
    %26 = arith.addf %24, %25 : vector<32x128xf32>
    %27 = arith.mulf %26, %16 : vector<32x128xf32>
    %cst_14 = arith.constant 0.254829586 : f32
    %28 = vector.broadcast %cst_14 : f32 to vector<32x128xf32>
    %29 = arith.addf %27, %28 : vector<32x128xf32>
    %30 = arith.mulf %29, %16 : vector<32x128xf32>
    %cst_15 = arith.constant 0.000000e+00 : f32
    %31 = vector.broadcast %cst_15 : f32 to vector<32x128xf32>
    %32 = arith.subf %31, %10 : vector<32x128xf32>
    %33 = arith.mulf %32, %10 : vector<32x128xf32>
    %34 = math.exp %33 : vector<32x128xf32>
    %35 = arith.mulf %30, %34 : vector<32x128xf32>
    %cst_16 = arith.constant 1.000000e+00 : f32
    %36 = vector.broadcast %cst_16 : f32 to vector<32x128xf32>
    %37 = arith.subf %36, %35 : vector<32x128xf32>
    %cst_17 = arith.constant 0.000000e+00 : f32
    %38 = vector.broadcast %cst_17 : f32 to vector<32x128xf32>
    %39 = arith.cmpf olt, %9, %38 : vector<32x128xf32>
    %cst_18 = arith.constant 0.000000e+00 : f32
    %40 = vector.broadcast %cst_18 : f32 to vector<32x128xf32>
    %41 = arith.subf %40, %37 : vector<32x128xf32>
    %42 = arith.select %39, %41, %37 : vector<32x128xi1>, vector<32x128xf32>
    %cst_19 = arith.constant 1.000000e+00 : f32
    %43 = vector.broadcast %cst_19 : f32 to vector<32x128xf32>
    %44 = arith.addf %43, %42 : vector<32x128xf32>
    %45 = arith.mulf %7, %44 : vector<32x128xf32>
    %46 = arith.truncf %45 : vector<32x128xf32> to vector<32x128xbf16>
    %c0_20 = arith.constant 0 : index
    %c0_21 = arith.constant 0 : index
    %47 = vector.load %arg4[%c0_20, %c0_21] : memref<128x128xbf16, #tpu.memory_space<vmem>>, vector<128x128xbf16>
    %cst_22 = arith.constant dense<0.000000e+00> : vector<32x128xf32>
    %48 = tpu.matmul %46, %47, %cst_22 {dimension_numbers = #tpu.dot_dimension_numbers<[1], [0], [0], [1], [0, 0, 1, 1], [], []>} : vector<32x128xbf16>, vector<128x128xbf16>, vector<32x128xf32> -> vector<32x128xf32>
    %c0_23 = arith.constant 0 : index
    %c0_24 = arith.constant 0 : index
    %49 = vector.load %arg5[%c0_23, %c0_24] : memref<1x128xf32, #tpu.memory_space<vmem>>, vector<1x128xf32>
    %50 = vector.broadcast %49 : vector<1x128xf32> to vector<32x128xf32>
    %51 = arith.addf %48, %50 : vector<32x128xf32>
    %c0_25 = arith.constant 0 : index
    %c0_26 = arith.constant 0 : index
    %52 = vector.load %arg6[%c0_25, %c0_26] : memref<32x128xf32, #tpu.memory_space<vmem>>, vector<32x128xf32>
    tpu.vector_store %arg6[%c0_25, %c0_26], %51 {strides = array<i32>} : memref<32x128xf32, #tpu.memory_space<vmem>>, vector<32x128xf32>,
    return
  }
  func.func @transform_0(%arg0: i32) -> (i32, i32) {
    %c0_i32 = arith.constant 0 : i32
    %c0_i32_0 = arith.constant 0 : i32
    return %arg0, %c0_i32 : i32, i32
  }
  func.func @transform_1(%arg0: i32) -> (i32, i32) {
    %c0_i32 = arith.constant 0 : i32
    %c0_i32_0 = arith.constant 0 : i32
    %c0_i32_1 = arith.constant 0 : i32
    return %c0_i32, %c0_i32_0 : i32, i32
  }
  func.func @transform_2(%arg0: i32) -> (i32, i32) {
    %c0_i32 = arith.constant 0 : i32
    %c0_i32_0 = arith.constant 0 : i32
    %c0_i32_1 = arith.constant 0 : i32
    return %c0_i32, %c0_i32_0 : i32, i32
  }
  func.func @transform_3(%arg0: i32) -> (i32, i32) {
    %c0_i32 = arith.constant 0 : i32
    %c0_i32_0 = arith.constant 0 : i32
    %c0_i32_1 = arith.constant 0 : i32
    return %c0_i32, %c0_i32_0 : i32, i32
  }
  func.func @transform_4(%arg0: i32) -> (i32, i32) {
    %c0_i32 = arith.constant 0 : i32
    %c0_i32_0 = arith.constant 0 : i32
    %c0_i32_1 = arith.constant 0 : i32
    return %c0_i32, %c0_i32_0 : i32, i32
  }
  func.func @transform_5(%arg0: i32) -> (i32, i32) {
    %c0_i32 = arith.constant 0 : i32
    %c0_i32_0 = arith.constant 0 : i32
    return %arg0, %c0_i32 : i32, i32
  }
}

</mosaic_0001>

<llo_original>
// kernel: tpu_custom_call.1
$region0: #{tpu_custom_call.1}
  #allocation0 [shape = 'u32[]', space=smem, size = 0x4, offset = 0x4, fixed_abs, tag = 'smem constant byte address 0x4 - core index']
  #allocation1 [shape = 'u32[144,128]{1,0:T(1,128)}', space=vmem, size = 0x12000, scoped, tag = 'internal scratch']
  %s0 = inlined_call_operand.hbm [shape: bf16[32,128], index: 0, kind: input, shape index: {}]
  %s1 = inlined_call_operand.hbm [shape: bf16[128,128], index: 1, kind: input, shape index: {}]
  %s2 = inlined_call_operand.vmem [shape: f32[1,128], index: 2, kind: input, shape index: {}]
  %s3 = inlined_call_operand.hbm [shape: bf16[128,128], index: 3, kind: input, shape index: {}]
  %s4 = inlined_call_operand.vmem [shape: f32[1,128], index: 4, kind: input, shape index: {}]
  %s5 = inlined_call_operand.hbm [shape: f32[32,128], index: 5, kind: output, shape index: {}]
  %s6 = sld [smem:[#allocation0]]
  $region42: #{tpu_custom_call.1} parent=0
    _
  %s8 = ssub.s32 1, %s6
  %s9 = scalar_select 0, %s8, %s6
  $region1: #{tpu_custom_call.1} parent=0
    #allocation2 [shape = 'u8[8192]{0}', space=vmem, size = 0x2000, scoped, tag = 'input window, operand 0, single buffered']
    #allocation3 [shape = 's32[1]{0}', space=sflag, size = 0x4, scoped, tag = 'scoped memory for tpu_custom_call.1']
    #allocation4 [shape = 's32[1]{0}', space=sflag, size = 0x4, scoped, tag = 'scoped memory for tpu_custom_call.1']
    #allocation5 [shape = 'u8[32768]{0}', space=vmem, size = 0x8000, scoped, tag = 'input window, operand 1, single buffered']
    #allocation6 [shape = 's32[1]{0}', space=sflag, size = 0x4, scoped, tag = 'scoped memory for tpu_custom_call.1']
    #allocation7 [shape = 'u8[32768]{0}', space=vmem, size = 0x8000, scoped, tag = 'input window, operand 3, single buffered']
    #allocation8 [shape = 'u8[16384]{0}', space=vmem, size = 0x4000, scoped, tag = 'output window, operand 0, single buffered']
    %10 = vsyncpa [#allocation3], 0
    %11 = vsyncpa [#allocation6], 0
    %12 = vsyncpa [#allocation4], 0
    // Predicated region
    $region2: #{tpu_custom_call.1} parent=1 // pred_check
      _
    $region3: #{tpu_custom_call.1} parent=1 // pred_check_branch
      %14 = sbr.rel (0) target = $region5
    $region4: #{tpu_custom_call.1} parent=1 // pred_region
      %s16 = ssub.s32 256, 256
      %17 = vsyncadd [#allocation3], %s16
      %s18 = sshll.u32 [#allocation2], 4
      %s19 = int_to_ptr.vmem [resolvable:$true] %s18
      %24 = dma.hbm_to_vmem [thread:$0]  %s0, 256, %s19, [#allocation3], 64, 64, 4
    $region5: #{tpu_custom_call.1} parent=1 // pred_fallthru
      _
    // Predicated region
    $region6: #{tpu_custom_call.1} parent=1 // pred_check
      _
    $region7: #{tpu_custom_call.1} parent=1 // pred_check_branch
      %26 = sbr.rel (0) target = $region9
    $region8: #{tpu_custom_call.1} parent=1 // pred_region
      %s28 = ssub.s32 1024, 1024
      %29 = vsyncadd [#allocation6], %s28
      %s30 = sshll.u32 [#allocation5], 4
      %s31 = int_to_ptr.vmem [resolvable:$true] %s30
      %36 = dma.hbm_to_vmem [thread:$0]  %s1, 1024, %s31, [#allocation6], 64, 64, 4
    $region9: #{tpu_custom_call.1} parent=1 // pred_fallthru
      _
    // Predicated region
    $region10: #{tpu_custom_call.1} parent=1 // pred_check
      _
    $region11: #{tpu_custom_call.1} parent=1 // pred_check_branch
      %38 = sbr.rel (0) target = $region13
    $region12: #{tpu_custom_call.1} parent=1 // pred_region
      _
    $region13: #{tpu_custom_call.1} parent=1 // pred_fallthru
      _
    // Predicated region
    $region14: #{tpu_custom_call.1} parent=1 // pred_check
      _
    $region15: #{tpu_custom_call.1} parent=1 // pred_check_branch
      %40 = sbr.rel (0) target = $region17
    $region16: #{tpu_custom_call.1} parent=1 // pred_region
      %s42 = ssub.s32 1024, 1024
      %43 = vsyncadd [#allocation6], %s42
      %s44 = sshll.u32 [#allocation7], 4
      %s45 = int_to_ptr.vmem [resolvable:$true] %s44
      %50 = dma.hbm_to_vmem [thread:$0]  %s3, 1024, %s45, [#allocation6], 64, 64, 4
    $region17: #{tpu_custom_call.1} parent=1 // pred_fallthru
      _
    // Predicated region
    $region18: #{tpu_custom_call.1} parent=1 // pred_check
      _
    $region19: #{tpu_custom_call.1} parent=1 // pred_check_branch
      %52 = sbr.rel (0) target = $region21
    $region20: #{tpu_custom_call.1} parent=1 // pred_region
      _
    $region21: #{tpu_custom_call.1} parent=1 // pred_fallthru
      _
    // Predicated region
    $region22: #{tpu_custom_call.1} parent=1 // pred_check
      _
    $region23: #{tpu_custom_call.1} parent=1 // pred_check_branch
      %54 = sbr.rel (0) target = $region25
    $region24: #{tpu_custom_call.1} parent=1 // pred_region
      %55 = dma.done [#allocation3], 256
    $region25: #{tpu_custom_call.1} parent=1 // pred_fallthru
      _
    // Predicated region
    $region26: #{tpu_custom_call.1} parent=1 // pred_check
      _
    $region27: #{tpu_custom_call.1} parent=1 // pred_check_branch
      %57 = sbr.rel (0) target = $region29
    $region28: #{tpu_custom_call.1} parent=1 // pred_region
      %58 = dma.done [#allocation6], 1024
    $region29: #{tpu_custom_call.1} parent=1 // pred_fallthru
      _
    // Predicated region
    $region30: #{tpu_custom_call.1} parent=1 // pred_check
      _
    $region31: #{tpu_custom_call.1} parent=1 // pred_check_branch
      %60 = sbr.rel (0) target = $region33
    $region32: #{tpu_custom_call.1} parent=1 // pred_region
      %61 = dma.done [#allocation6], 1024
    $region33: #{tpu_custom_call.1} parent=1 // pred_fallthru
      _
    %v63 = vld [vmem:[#allocation2] sm:$0xf]
    %v64 = vld [vmem:[#allocation2 + $0x4] sm:$0xf]
    %v65 = vld [vmem:[#allocation2 + $0x8] sm:$0xf]
    %v66 = vld [vmem:[#allocation2 + $0xc] sm:$0xf]
    %v67 = vld [vmem:[#allocation5] sm:$0xf]
    %v68 = vld [vmem:[#allocation5 + $0x4] sm:$0xf]
    %v69 = vld [vmem:[#allocation5 + $0x8] sm:$0xf]
    %v70 = vld [vmem:[#allocation5 + $0xc] sm:$0xf]
    %v71 = vld [vmem:[#allocation5 + $0x10] sm:$0xf]
    %v72 = vld [vmem:[#allocation5 + $0x14] sm:$0xf]
    %v73 = vld [vmem:[#allocation5 + $0x18] sm:$0xf]
    %v74 = vld [vmem:[#allocation5 + $0x1c] sm:$0xf]
    %v75 = vld [vmem:[#allocation5 + $0x20] sm:$0xf]
    %v76 = vld [vmem:[#allocation5 + $0x24] sm:$0xf]
    %v77 = vld [vmem:[#allocation5 + $0x28] sm:$0xf]
    %v78 = vld [vmem:[#allocation5 + $0x2c] sm:$0xf]
    %v79 = vld [vmem:[#allocation5 + $0x30] sm:$0xf]
    %v80 = vld [vmem:[#allocation5 + $0x34] sm:$0xf]
    %v81 = vld [vmem:[#allocation5 + $0x38] sm:$0xf]
    %v82 = vld [vmem:[#allocation5 + $0x3c] sm:$0xf]
    %v83 = vld [vmem:[%s2] sm:$0x1]
    %v85 = vlaneseq
    %v86 = vshrl.u32 %v85, 7
    %v87 = vsub.s32 0, %v86
    %v88 = vrot.slane %v83, %v87
    %v94 = vunpack.c.l.b16 %v63
    %v95 = vunpack.c.l.b16 %v64
    %v96 = vunpack.c.l.b16 %v65
    %v97 = vunpack.c.l.b16 %v66
    %v98 = vpack.c.b16 %v95, %v94
    %v99 = vpack.c.b16 %v97, %v96
    %v118 = vunpack.c.l.b16 %v67
    %v119 = vunpack.c.l.b16 %v68
    %v120 = vunpack.c.l.b16 %v69
    %v121 = vunpack.c.l.b16 %v70
    %v122 = vunpack.c.l.b16 %v71
    %v123 = vunpack.c.l.b16 %v72
    %v124 = vunpack.c.l.b16 %v73
    %v125 = vunpack.c.l.b16 %v74
    %v126 = vunpack.c.l.b16 %v75
    %v127 = vunpack.c.l.b16 %v76
    %v128 = vunpack.c.l.b16 %v77
    %v129 = vunpack.c.l.b16 %v78
    %v130 = vunpack.c.l.b16 %v79
    %v131 = vunpack.c.l.b16 %v80
    %v132 = vunpack.c.l.b16 %v81
    %v133 = vunpack.c.l.b16 %v82
    %v134 = vpack.c.b16 %v119, %v118
    %v135 = vpack.c.b16 %v121, %v120
    %v136 = vpack.c.b16 %v123, %v122
    %v137 = vpack.c.b16 %v125, %v124
    %v138 = vpack.c.b16 %v127, %v126
    %v139 = vpack.c.b16 %v129, %v128
    %v140 = vpack.c.b16 %v131, %v130
    %v141 = vpack.c.b16 %v133, %v132
    %150 = vmatprep.subr.bf16.mxu0 0
    %151 = vmatpush1.bf16.msra.mxu0 %v141
    %152 = vmatprep.subr.bf16.mxu0 0
    %153 = vmatpush1.bf16.msra.mxu0 %v140
    %154 = vmatprep.subr.bf16.mxu0 0
    %155 = vmatpush1.bf16.msra.mxu0 %v139
    %156 = vmatprep.subr.bf16.mxu0 0
    %157 = vmatpush1.bf16.msra.mxu0 %v138
    %158 = vmatprep.subr.bf16.mxu0 0
    %159 = vmatpush1.bf16.msra.mxu0 %v137
    %160 = vmatprep.subr.bf16.mxu0 0
    %161 = vmatpush1.bf16.msra.mxu0 %v136
    %162 = vmatprep.subr.bf16.mxu0 0
    %163 = vmatpush1.bf16.msra.mxu0 %v135
    %164 = vmatprep.subr.bf16.mxu0 0
    %165 = vmatpush1.bf16.msra.mxu0 %v134
    %166 = vmatprep.subr.bf16.mxu0 0
    %167 = vmatpush2.bf16.msra.mxu0 0
    %168 = vmatprep.subr.bf16.mxu0 0
    %169 = vmatpush2.bf16.msra.mxu0 0
    %170 = vmatprep.subr.bf16.mxu0 0
    %171 = vmatpush2.bf16.msra.mxu0 0
    %172 = vmatprep.subr.bf16.mxu0 0
    %173 = vmatpush2.bf16.msra.mxu0 0
    %174 = vmatprep.subr.bf16.mxu0 0
    %175 = vmatpush2.bf16.msra.mxu0 0
    %176 = vmatprep.subr.bf16.mxu0 0
    %177 = vmatpush2.bf16.msra.mxu0 0
    %178 = vmatprep.subr.bf16.mxu0 0
    %179 = vmatpush2.bf16.msra.mxu0 0
    %180 = vmatprep.subr.bf16.mxu0 0
    %181 = vmatpush2.bf16.msra.mxu0 0
    %182 = vmatprep.mubr.bf16.mxu0 0
    %183 = vmatmul.mubr.bf16.gmra.mxu0 %v98
    %v184 = vpop.f32.mrf.mxu0
    %v185 = vadd.f32 %v88, %v184
    %v186 = vpop.f32.mrf.mxu0
    %v187 = vpop.f32.mrf.mxu0
    %v188 = vadd.f32 %v88, %v187
    %v189 = vpop.f32.mrf.mxu0
    %190 = vmatprep.mubr.bf16.mxu0 0
    %191 = vmatmul.mubr.bf16.gmra.mxu0 %v99
    %v192 = vpop.f32.mrf.mxu0
    %v193 = vadd.f32 %v88, %v192
    %v194 = vpop.f32.mrf.mxu0
    %v195 = vpop.f32.mrf.mxu0
    %v196 = vadd.f32 %v88, %v195
    %v197 = vpop.f32.mrf.mxu0
    %198 = vdwg.mxu0
    %v199 = vmul.f32 %v185, 0.5
    %v200 = vmul.f32 %v188, 0.5
    %v201 = vmul.f32 %v193, 0.5
    %v202 = vmul.f32 %v196, 0.5
    %v203 = vmul.f32 %v185, 0.70710677
    %v204 = vmul.f32 %v188, 0.70710677
    %v205 = vmul.f32 %v193, 0.70710677
    %v206 = vmul.f32 %v196, 0.70710677
    %v207 = vand.u32 2147483647, %v203
    %v208 = vand.u32 2147483647, %v204
    %v209 = vand.u32 2147483647, %v205
    %v210 = vand.u32 2147483647, %v206
    %v211 = vmul.f32 %v207, 0.3275911
    %v212 = vmul.f32 %v208, 0.3275911
    %v213 = vmul.f32 %v209, 0.3275911
    %v214 = vmul.f32 %v210, 0.3275911
    %v215 = vadd.f32 %v211, 1.0
    %v216 = vadd.f32 %v212, 1.0
    %v217 = vadd.f32 %v213, 1.0
    %v218 = vadd.f32 %v214, 1.0
    %v219 = vrcp.pop %v215
    %v220 = vmul.f32 1.0, %v219
    %v221 = vrcp.pop %v216
    %v222 = vmul.f32 1.0, %v221
    %v223 = vrcp.pop %v217
    %v224 = vmul.f32 1.0, %v223
    %v225 = vrcp.pop %v218
    %v226 = vmul.f32 1.0, %v225
    %v227 = vmul.f32 %v220, 1.0614054
    %v228 = vmul.f32 %v222, 1.0614054
    %v229 = vmul.f32 %v224, 1.0614054
    %v230 = vmul.f32 %v226, 1.0614054
    %v231 = vadd.f32 %v227, -1.4531521
    %v232 = vadd.f32 %v228, -1.4531521
    %v233 = vadd.f32 %v229, -1.4531521
    %v234 = vadd.f32 %v230, -1.4531521
    %v235 = vmul.f32 %v231, %v220
    %v236 = vmul.f32 %v232, %v222
    %v237 = vmul.f32 %v233, %v224
    %v238 = vmul.f32 %v234, %v226
    %v239 = vadd.f32 %v235, 1.4214138
    %v240 = vadd.f32 %v236, 1.4214138
    %v241 = vadd.f32 %v237, 1.4214138
    %v242 = vadd.f32 %v238, 1.4214138
    %v243 = vmul.f32 %v239, %v220
    %v244 = vmul.f32 %v240, %v222
    %v245 = vmul.f32 %v241, %v224
    %v246 = vmul.f32 %v242, %v226
    %v247 = vadd.f32 %v243, -0.28449672
    %v248 = vadd.f32 %v244, -0.28449672
    %v249 = vadd.f32 %v245, -0.28449672
    %v250 = vadd.f32 %v246, -0.28449672
    %v251 = vmul.f32 %v247, %v220
    %v252 = vmul.f32 %v248, %v222
    %v253 = vmul.f32 %v249, %v224
    %v254 = vmul.f32 %v250, %v226
    %v255 = vadd.f32 %v251, 0.2548296
    %v256 = vadd.f32 %v252, 0.2548296
    %v257 = vadd.f32 %v253, 0.2548296
    %v258 = vadd.f32 %v254, 0.2548296
    %v259 = vmul.f32 %v255, %v220
    %v260 = vmul.f32 %v256, %v222
    %v261 = vmul.f32 %v257, %v224
    %v262 = vmul.f32 %v258, %v226
    %v263 = vsub.f32 0.0, %v207
    %v264 = vsub.f32 0.0, %v208
    %v265 = vsub.f32 0.0, %v209
    %v266 = vsub.f32 0.0, %v210
    %v267 = vmul.f32 %v263, %v207
    %v268 = vmul.f32 %v264, %v208
    %v269 = vmul.f32 %v265, %v209
    %v270 = vmul.f32 %v266, %v210
    %v271 = vmul.f32 %v267, 1.442695
    %v272 = vpow.pop %v271
    %v273 = vmul.f32 %v268, 1.442695
    %v274 = vpow.pop %v273
    %v275 = vmul.f32 %v269, 1.442695
    %v276 = vpow.pop %v275
    %v277 = vmul.f32 %v270, 1.442695
    %v278 = vpow.pop %v277
    %v279 = vmul.f32 %v259, %v272
    %v280 = vmul.f32 %v260, %v274
    %v281 = vmul.f32 %v261, %v276
    %v282 = vmul.f32 %v262, %v278
    %v283 = vsub.f32 1.0, %v279
    %v284 = vsub.f32 1.0, %v280
    %v285 = vsub.f32 1.0, %v281
    %v286 = vsub.f32 1.0, %v282
    %vm287 = vcmp.lt.f32.partialorder %v203, 0.0
    %vm288 = vcmp.lt.f32.partialorder %v204, 0.0
    %vm289 = vcmp.lt.f32.partialorder %v205, 0.0
    %vm290 = vcmp.lt.f32.partialorder %v206, 0.0
    %v291 = vsub.f32 0.0, %v283
    %v292 = vsub.f32 0.0, %v284
    %v293 = vsub.f32 0.0, %v285
    %v294 = vsub.f32 0.0, %v286
    %v295 = vsel %vm287, %v291, %v283
    %v296 = vsel %vm288, %v292, %v284
    %v297 = vsel %vm289, %v293, %v285
    %v298 = vsel %vm290, %v294, %v286
    %v299 = vadd.f32 %v295, 1.0
    %v300 = vadd.f32 %v296, 1.0
    %v301 = vadd.f32 %v297, 1.0
    %v302 = vadd.f32 %v298, 1.0
    %v303 = vmul.f32 %v199, %v299
    %v304 = vmul.f32 %v200, %v300
    %v305 = vmul.f32 %v201, %v301
    %v306 = vmul.f32 %v202, %v302
    %v307 = vpack.c.bf16 %v304, %v303
    %v308 = vpack.c.bf16 %v306, %v305
    %v309 = vld [vmem:[#allocation7] sm:$0xf]
    %v310 = vld [vmem:[#allocation7 + $0x4] sm:$0xf]
    %v311 = vld [vmem:[#allocation7 + $0x8] sm:$0xf]
    %v312 = vld [vmem:[#allocation7 + $0xc] sm:$0xf]
    %v313 = vld [vmem:[#allocation7 + $0x10] sm:$0xf]
    %v314 = vld [vmem:[#allocation7 + $0x14] sm:$0xf]
    %v315 = vld [vmem:[#allocation7 + $0x18] sm:$0xf]
    %v316 = vld [vmem:[#allocation7 + $0x1c] sm:$0xf]
    %v317 = vld [vmem:[#allocation7 + $0x20] sm:$0xf]
    %v318 = vld [vmem:[#allocation7 + $0x24] sm:$0xf]
    %v319 = vld [vmem:[#allocation7 + $0x28] sm:$0xf]
    %v320 = vld [vmem:[#allocation7 + $0x2c] sm:$0xf]
    %v321 = vld [vmem:[#allocation7 + $0x30] sm:$0xf]
    %v322 = vld [vmem:[#allocation7 + $0x34] sm:$0xf]
    %v323 = vld [vmem:[#allocation7 + $0x38] sm:$0xf]
    %v324 = vld [vmem:[#allocation7 + $0x3c] sm:$0xf]
    %v325 = vld [vmem:[%s4] sm:$0x1]
    %v327 = vlaneseq
    %v328 = vshrl.u32 %v327, 7
    %v329 = vsub.s32 0, %v328
    %v330 = vrot.slane %v325, %v329
    %v348 = vunpack.c.l.b16 %v309
    %v349 = vunpack.c.l.b16 %v310
    %v350 = vunpack.c.l.b16 %v311
    %v351 = vunpack.c.l.b16 %v312
    %v352 = vunpack.c.l.b16 %v313
    %v353 = vunpack.c.l.b16 %v314
    %v354 = vunpack.c.l.b16 %v315
    %v355 = vunpack.c.l.b16 %v316
    %v356 = vunpack.c.l.b16 %v317
    %v357 = vunpack.c.l.b16 %v318
    %v358 = vunpack.c.l.b16 %v319
    %v359 = vunpack.c.l.b16 %v320
    %v360 = vunpack.c.l.b16 %v321
    %v361 = vunpack.c.l.b16 %v322
    %v362 = vunpack.c.l.b16 %v323
    %v363 = vunpack.c.l.b16 %v324
    %v364 = vpack.c.b16 %v349, %v348
    %v365 = vpack.c.b16 %v351, %v350
    %v366 = vpack.c.b16 %v353, %v352
    %v367 = vpack.c.b16 %v355, %v354
    %v368 = vpack.c.b16 %v357, %v356
    %v369 = vpack.c.b16 %v359, %v358
    %v370 = vpack.c.b16 %v361, %v360
    %v371 = vpack.c.b16 %v363, %v362
    %380 = vmatprep.subr.bf16.mxu0 0
    %381 = vmatpush1.bf16.msra.mxu0 %v371
    %382 = vmatprep.subr.bf16.mxu0 0
    %383 = vmatpush1.bf16.msra.mxu0 %v370
    %384 = vmatprep.subr.bf16.mxu0 0
    %385 = vmatpush1.bf16.msra.mxu0 %v369
    %386 = vmatprep.subr.bf16.mxu0 0
    %387 = vmatpush1.bf16.msra.mxu0 %v368
    %388 = vmatprep.subr.bf16.mxu0 0
    %389 = vmatpush1.bf16.msra.mxu0 %v367
    %390 = vmatprep.subr.bf16.mxu0 0
    %391 = vmatpush1.bf16.msra.mxu0 %v366
    %392 = vmatprep.subr.bf16.mxu0 0
    %393 = vmatpush1.bf16.msra.mxu0 %v365
    %394 = vmatprep.subr.bf16.mxu0 0
    %395 = vmatpush1.bf16.msra.mxu0 %v364
    %396 = vmatprep.subr.bf16.mxu0 0
    %397 = vmatpush2.bf16.msra.mxu0 0
    %398 = vmatprep.subr.bf16.mxu0 0
    %399 = vmatpush2.bf16.msra.mxu0 0
    %400 = vmatprep.subr.bf16.mxu0 0
    %401 = vmatpush2.bf16.msra.mxu0 0
    %402 = vmatprep.subr.bf16.mxu0 0
    %403 = vmatpush2.bf16.msra.mxu0 0
    %404 = vmatprep.subr.bf16.mxu0 0
    %405 = vmatpush2.bf16.msra.mxu0 0
    %406 = vmatprep.subr.bf16.mxu0 0
    %407 = vmatpush2.bf16.msra.mxu0 0
    %408 = vmatprep.subr.bf16.mxu0 0
    %409 = vmatpush2.bf16.msra.mxu0 0
    %410 = vmatprep.subr.bf16.mxu0 0
    %411 = vmatpush2.bf16.msra.mxu0 0
    %412 = vmatprep.mubr.bf16.mxu0 0
    %413 = vmatmul.mubr.bf16.gmra.mxu0 %v307
    %v414 = vpop.f32.mrf.mxu0
    %v415 = vadd.f32 %v330, %v414
    %v416 = vpop.f32.mrf.mxu0
    %v417 = vpop.f32.mrf.mxu0
    %v418 = vadd.f32 %v330, %v417
    %v419 = vpop.f32.mrf.mxu0
    %420 = vmatprep.mubr.bf16.mxu0 0
    %421 = vmatmul.mubr.bf16.gmra.mxu0 %v308
    %v422 = vpop.f32.mrf.mxu0
    %v423 = vadd.f32 %v330, %v422
    %v424 = vpop.f32.mrf.mxu0
    %v425 = vpop.f32.mrf.mxu0
    %v426 = vadd.f32 %v330, %v425
    %v427 = vpop.f32.mrf.mxu0
    %428 = vdwg.mxu0
    %429 = vst [vmem:[#allocation8] sm:$0xff] %v415
    %430 = vst [vmem:[#allocation8 + $0x8] sm:$0xff] %v418
    %431 = vst [vmem:[#allocation8 + $0x10] sm:$0xff] %v423
    %432 = vst [vmem:[#allocation8 + $0x18] sm:$0xff] %v426
    // Predicated region
    $region34: #{tpu_custom_call.1} parent=1 // pred_check
      _
    $region35: #{tpu_custom_call.1} parent=1 // pred_check_branch
      %434 = sbr.rel (0) target = $region37
    $region36: #{tpu_custom_call.1} parent=1 // pred_region
      %s436 = ssub.s32 512, 512
      %437 = vsyncadd [#allocation4], %s436
      %s438 = sshll.u32 [#allocation8], 4
      %s439 = int_to_ptr.vmem [resolvable:$true] %s438
      %444 = dma.vmem_to_hbm [thread:$0]  %s439, 512, %s5, [#allocation4], 128, 128, 8
    $region37: #{tpu_custom_call.1} parent=1 // pred_fallthru
      _
    // Predicated region
    $region38: #{tpu_custom_call.1} parent=1 // pred_check
      _
    $region39: #{tpu_custom_call.1} parent=1 // pred_check_branch
      %446 = sbr.rel (0) target = $region41
    $region40: #{tpu_custom_call.1} parent=1 // pred_region
      %447 = dma.done [#allocation4], 512
    $region41: #{tpu_custom_call.1} parent=1 // pred_fallthru
      _
    %448 = vsyncpa [#allocation3], 1
    %449 = vsyncpa [#allocation6], 1
    %450 = vsyncpa [#allocation4], 1

// kernel: tpu_custom_call.1
$region0: #{tpu_custom_call.1}
  #allocation0 [shape = 'u32[]', space=smem, size = 0x4, offset = 0x4, fixed_abs, tag = 'smem constant byte address 0x4 - core index']
  #allocation1 [shape = 'u32[144,128]{1,0:T(1,128)}', space=vmem, size = 0x12000, scoped, tag = 'internal scratch']
  %s0 = inlined_call_operand.hbm [shape: bf16[32,128], index: 0, kind: input, shape index: {}]
  %s1 = inlined_call_operand.hbm [shape: bf16[128,128], index: 1, kind: input, shape index: {}]
  %s2 = inlined_call_operand.vmem [shape: f32[1,128], index: 2, kind: input, shape index: {}]
  %s3 = inlined_call_operand.hbm [shape: bf16[128,128], index: 3, kind: input, shape index: {}]
  %s4 = inlined_call_operand.vmem [shape: f32[1,128], index: 4, kind: input, shape index: {}]
  %s5 = inlined_call_operand.hbm [shape: f32[32,128], index: 5, kind: output, shape index: {}]
  %s6 = sld [smem:[#allocation0]]
  $region42: #{tpu_custom_call.1} parent=0
    _
  %s8 = ssub.s32 1, %s6
  %s9 = scalar_select 0, %s8, %s6
  $region1: #{tpu_custom_call.1} parent=0
    #allocation2 [shape = 'u8[8192]{0}', space=vmem, size = 0x2000, scoped, tag = 'input window, operand 0, single buffered']
    #allocation3 [shape = 's32[1]{0}', space=sflag, size = 0x4, scoped, tag = 'scoped memory for tpu_custom_call.1']
    #allocation4 [shape = 's32[1]{0}', space=sflag, size = 0x4, scoped, tag = 'scoped memory for tpu_custom_call.1']
    #allocation5 [shape = 'u8[32768]{0}', space=vmem, size = 0x8000, scoped, tag = 'input window, operand 1, single buffered']
    #allocation6 [shape = 's32[1]{0}', space=sflag, size = 0x4, scoped, tag = 'scoped memory for tpu_custom_call.1']
    #allocation7 [shape = 'u8[32768]{0}', space=vmem, size = 0x8000, scoped, tag = 'input window, operand 3, single buffered']
    #allocation8 [shape = 'u8[16384]{0}', space=vmem, size = 0x4000, scoped, tag = 'output window, operand 0, single buffered']
    %10 = vsyncpa [#allocation3], 0
    %11 = vsyncpa [#allocation6], 0
    %12 = vsyncpa [#allocation4], 0
    // Predicated region
    $region2: #{tpu_custom_call.1} parent=1 // pred_check
      _
    $region3: #{tpu_custom_call.1} parent=1 // pred_check_branch
      %14 = sbr.rel (0) target = $region5
    $region4: #{tpu_custom_call.1} parent=1 // pred_region
      %s16 = ssub.s32 256, 256
      %17 = vsyncadd [#allocation3], %s16
      %s18 = sshll.u32 [#allocation2], 4
      %s19 = int_to_ptr.vmem [resolvable:$true] %s18
      %24 = dma.hbm_to_vmem [thread:$0]  %s0, 256, %s19, [#allocation3], 64, 64, 4
    $region5: #{tpu_custom_call.1} parent=1 // pred_fallthru
      _
    // Predicated region
    $region6: #{tpu_custom_call.1} parent=1 // pred_check
      _
    $region7: #{tpu_custom_call.1} parent=1 // pred_check_branch
      %26 = sbr.rel (0) target = $region9
    $region8: #{tpu_custom_call.1} parent=1 // pred_region
      %s28 = ssub.s32 1024, 1024
      %29 = vsyncadd [#allocation6], %s28
      %s30 = sshll.u32 [#allocation5], 4
      %s31 = int_to_ptr.vmem [resolvable:$true] %s30
      %36 = dma.hbm_to_vmem [thread:$0]  %s1, 1024, %s31, [#allocation6], 64, 64, 4
    $region9: #{tpu_custom_call.1} parent=1 // pred_fallthru
      _
    // Predicated region
    $region10: #{tpu_custom_call.1} parent=1 // pred_check
      _
    $region11: #{tpu_custom_call.1} parent=1 // pred_check_branch
      %38 = sbr.rel (0) target = $region13
    $region12: #{tpu_custom_call.1} parent=1 // pred_region
      _
    $region13: #{tpu_custom_call.1} parent=1 // pred_fallthru
      _
    // Predicated region
    $region14: #{tpu_custom_call.1} parent=1 // pred_check
      _
    $region15: #{tpu_custom_call.1} parent=1 // pred_check_branch
      %40 = sbr.rel (0) target = $region17
    $region16: #{tpu_custom_call.1} parent=1 // pred_region
      %s42 = ssub.s32 1024, 1024
      %43 = vsyncadd [#allocation6], %s42
      %s44 = sshll.u32 [#allocation7], 4
      %s45 = int_to_ptr.vmem [resolvable:$true] %s44
      %50 = dma.hbm_to_vmem [thread:$0]  %s3, 1024, %s45, [#allocation6], 64, 64, 4
    $region17: #{tpu_custom_call.1} parent=1 // pred_fallthru
      _
    // Predicated region
    $region18: #{tpu_custom_call.1} parent=1 // pred_check
      _
    $region19: #{tpu_custom_call.1} parent=1 // pred_check_branch
      %52 = sbr.rel (0) target = $region21
    $region20: #{tpu_custom_call.1} parent=1 // pred_region
      _
    $region21: #{tpu_custom_call.1} parent=1 // pred_fallthru
      _
    // Predicated region
    $region22: #{tpu_custom_call.1} parent=1 // pred_check
      _
    $region23: #{tpu_custom_call.1} parent=1 // pred_check_branch
      %54 = sbr.rel (0) target = $region25
    $region24: #{tpu_custom_call.1} parent=1 // pred_region
      %55 = dma.done [#allocation3], 256
    $region25: #{tpu_custom_call.1} parent=1 // pred_fallthru
      _
    // Predicated region
    $region26: #{tpu_custom_call.1} parent=1 // pred_check
      _
    $region27: #{tpu_custom_call.1} parent=1 // pred_check_branch
      %57 = sbr.rel (0) target = $region29
    $region28: #{tpu_custom_call.1} parent=1 // pred_region
      %58 = dma.done [#allocation6], 1024
    $region29: #{tpu_custom_call.1} parent=1 // pred_fallthru
      _
    // Predicated region
    $region30: #{tpu_custom_call.1} parent=1 // pred_check
      _
    $region31: #{tpu_custom_call.1} parent=1 // pred_check_branch
      %60 = sbr.rel (0) target = $region33
    $region32: #{tpu_custom_call.1} parent=1 // pred_region
      %61 = dma.done [#allocation6], 1024
    $region33: #{tpu_custom_call.1} parent=1 // pred_fallthru
      _
    %v63 = vld [vmem:[#allocation2] sm:$0xf]
    %v64 = vld [vmem:[#allocation2 + $0x4] sm:$0xf]
    %v65 = vld [vmem:[#allocation2 + $0x8] sm:$0xf]
    %v66 = vld [vmem:[#allocation2 + $0xc] sm:$0xf]
    %v67 = vld [vmem:[#allocation5] sm:$0xf]
    %v68 = vld [vmem:[#allocation5 + $0x4] sm:$0xf]
    %v69 = vld [vmem:[#allocation5 + $0x8] sm:$0xf]
    %v70 = vld [vmem:[#allocation5 + $0xc] sm:$0xf]
    %v71 = vld [vmem:[#allocation5 + $0x10] sm:$0xf]
    %v72 = vld [vmem:[#allocation5 + $0x14] sm:$0xf]
    %v73 = vld [vmem:[#allocation5 + $0x18] sm:$0xf]
    %v74 = vld [vmem:[#allocation5 + $0x1c] sm:$0xf]
    %v75 = vld [vmem:[#allocation5 + $0x20] sm:$0xf]
    %v76 = vld [vmem:[#allocation5 + $0x24] sm:$0xf]
    %v77 = vld [vmem:[#allocation5 + $0x28] sm:$0xf]
    %v78 = vld [vmem:[#allocation5 + $0x2c] sm:$0xf]
    %v79 = vld [vmem:[#allocation5 + $0x30] sm:$0xf]
    %v80 = vld [vmem:[#allocation5 + $0x34] sm:$0xf]
    %v81 = vld [vmem:[#allocation5 + $0x38] sm:$0xf]
    %v82 = vld [vmem:[#allocation5 + $0x3c] sm:$0xf]
    %v83 = vld [vmem:[%s2] sm:$0x1]
    %v85 = vlaneseq
    %v86 = vshrl.u32 %v85, 7
    %v87 = vsub.s32 0, %v86
    %v88 = vrot.slane %v83, %v87
    %v94 = vunpack.c.l.b16 %v63
    %v95 = vunpack.c.l.b16 %v64
    %v96 = vunpack.c.l.b16 %v65
    %v97 = vunpack.c.l.b16 %v66
    %v98 = vpack.c.b16 %v95, %v94
    %v99 = vpack.c.b16 %v97, %v96
    %v118 = vunpack.c.l.b16 %v67
    %v119 = vunpack.c.l.b16 %v68
    %v120 = vunpack.c.l.b16 %v69
    %v121 = vunpack.c.l.b16 %v70
    %v122 = vunpack.c.l.b16 %v71
    %v123 = vunpack.c.l.b16 %v72
    %v124 = vunpack.c.l.b16 %v73
    %v125 = vunpack.c.l.b16 %v74
    %v126 = vunpack.c.l.b16 %v75
    %v127 = vunpack.c.l.b16 %v76
    %v128 = vunpack.c.l.b16 %v77
    %v129 = vunpack.c.l.b16 %v78
    %v130 = vunpack.c.l.b16 %v79
    %v131 = vunpack.c.l.b16 %v80
    %v132 = vunpack.c.l.b16 %v81
    %v133 = vunpack.c.l.b16 %v82
    %v134 = vpack.c.b16 %v119, %v118
    %v135 = vpack.c.b16 %v121, %v120
    %v136 = vpack.c.b16 %v123, %v122
    %v137 = vpack.c.b16 %v125, %v124
    %v138 = vpack.c.b16 %v127, %v126
    %v139 = vpack.c.b16 %v129, %v128
    %v140 = vpack.c.b16 %v131, %v130
    %v141 = vpack.c.b16 %v133, %v132
    %150 = vmatprep.subr.bf16.mxu0 0
    %151 = vmatpush1.bf16.msra.mxu0 %v141
    %152 = vmatprep.subr.bf16.mxu0 0
    %153 = vmatpush1.bf16.msra.mxu0 %v140
    %154 = vmatprep.subr.bf16.mxu0 0
    %155 = vmatpush1.bf16.msra.mxu0 %v139
    %156 = vmatprep.subr.bf16.mxu0 0
    %157 = vmatpush1.bf16.msra.mxu0 %v138
    %158 = vmatprep.subr.bf16.mxu0 0
    %159 = vmatpush1.bf16.msra.mxu0 %v137
    %160 = vmatprep.subr.bf16.mxu0 0
    %161 = vmatpush1.bf16.msra.mxu0 %v136
    %162 = vmatprep.subr.bf16.mxu0 0
    %163 = vmatpush1.bf16.msra.mxu0 %v135
    %164 = vmatprep.subr.bf16.mxu0 0
    %165 = vmatpush1.bf16.msra.mxu0 %v134
    %166 = vmatprep.subr.bf16.mxu0 0
    %167 = vmatpush2.bf16.msra.mxu0 0
    %168 = vmatprep.subr.bf16.mxu0 0
    %169 = vmatpush2.bf16.msra.mxu0 0
    %170 = vmatprep.subr.bf16.mxu0 0
    %171 = vmatpush2.bf16.msra.mxu0 0
    %172 = vmatprep.subr.bf16.mxu0 0
    %173 = vmatpush2.bf16.msra.mxu0 0
    %174 = vmatprep.subr.bf16.mxu0 0
    %175 = vmatpush2.bf16.msra.mxu0 0
    %176 = vmatprep.subr.bf16.mxu0 0
    %177 = vmatpush2.bf16.msra.mxu0 0
    %178 = vmatprep.subr.bf16.mxu0 0
    %179 = vmatpush2.bf16.msra.mxu0 0
    %180 = vmatprep.subr.bf16.mxu0 0
    %181 = vmatpush2.bf16.msra.mxu0 0
    %182 = vmatprep.mubr.bf16.mxu0 0
    %183 = vmatmul.mubr.bf16.gmra.mxu0 %v98
    %v184 = vpop.f32.mrf.mxu0
    %v185 = vadd.f32 %v88, %v184
    %v186 = vpop.f32.mrf.mxu0
    %v187 = vpop.f32.mrf.mxu0
    %v188 = vadd.f32 %v88, %v187
    %v189 = vpop.f32.mrf.mxu0
    %190 = vmatprep.mubr.bf16.mxu0 0
    %191 = vmatmul.mubr.bf16.gmra.mxu0 %v99
    %v192 = vpop.f32.mrf.mxu0
    %v193 = vadd.f32 %v88, %v192
    %v194 = vpop.f32.mrf.mxu0
    %v195 = vpop.f32.mrf.mxu0
    %v196 = vadd.f32 %v88, %v195
    %v197 = vpop.f32.mrf.mxu0
    %198 = vdwg.mxu0
    %v199 = vmul.f32 %v185, 0.5
    %v200 = vmul.f32 %v188, 0.5
    %v201 = vmul.f32 %v193, 0.5
    %v202 = vmul.f32 %v196, 0.5
    %v203 = vmul.f32 %v185, 0.70710677
    %v204 = vmul.f32 %v188, 0.70710677
    %v205 = vmul.f32 %v193, 0.70710677
    %v206 = vmul.f32 %v196, 0.70710677
    %v207 = vand.u32 2147483647, %v203
    %v208 = vand.u32 2147483647, %v204
    %v209 = vand.u32 2147483647, %v205
    %v210 = vand.u32 2147483647, %v206
    %v211 = vmul.f32 %v207, 0.3275911
    %v212 = vmul.f32 %v208, 0.3275911
    %v213 = vmul.f32 %v209, 0.3275911
    %v214 = vmul.f32 %v210, 0.3275911
    %v215 = vadd.f32 %v211, 1.0
    %v216 = vadd.f32 %v212, 1.0
    %v217 = vadd.f32 %v213, 1.0
    %v218 = vadd.f32 %v214, 1.0
    %v219 = vrcp.pop %v215
    %v220 = vmul.f32 1.0, %v219
    %v221 = vrcp.pop %v216
    %v222 = vmul.f32 1.0, %v221
    %v223 = vrcp.pop %v217
    %v224 = vmul.f32 1.0, %v223
    %v225 = vrcp.pop %v218
    %v226 = vmul.f32 1.0, %v225
    %v227 = vmul.f32 %v220, 1.0614054
    %v228 = vmul.f32 %v222, 1.0614054
    %v229 = vmul.f32 %v224, 1.0614054
    %v230 = vmul.f32 %v226, 1.0614054
    %v231 = vadd.f32 %v227, -1.4531521
    %v232 = vadd.f32 %v228, -1.4531521
    %v233 = vadd.f32 %v229, -1.4531521
    %v234 = vadd.f32 %v230, -1.4531521
    %v235 = vmul.f32 %v231, %v220
    %v236 = vmul.f32 %v232, %v222
    %v237 = vmul.f32 %v233, %v224
    %v238 = vmul.f32 %v234, %v226
    %v239 = vadd.f32 %v235, 1.4214138
    %v240 = vadd.f32 %v236, 1.4214138
    %v241 = vadd.f32 %v237, 1.4214138
    %v242 = vadd.f32 %v238, 1.4214138
    %v243 = vmul.f32 %v239, %v220
    %v244 = vmul.f32 %v240, %v222
    %v245 = vmul.f32 %v241, %v224
    %v246 = vmul.f32 %v242, %v226
    %v247 = vadd.f32 %v243, -0.28449672
    %v248 = vadd.f32 %v244, -0.28449672
    %v249 = vadd.f32 %v245, -0.28449672
    %v250 = vadd.f32 %v246, -0.28449672
    %v251 = vmul.f32 %v247, %v220
    %v252 = vmul.f32 %v248, %v222
    %v253 = vmul.f32 %v249, %v224
    %v254 = vmul.f32 %v250, %v226
    %v255 = vadd.f32 %v251, 0.2548296
    %v256 = vadd.f32 %v252, 0.2548296
    %v257 = vadd.f32 %v253, 0.2548296
    %v258 = vadd.f32 %v254, 0.2548296
    %v259 = vmul.f32 %v255, %v220
    %v260 = vmul.f32 %v256, %v222
    %v261 = vmul.f32 %v257, %v224
    %v262 = vmul.f32 %v258, %v226
    %v263 = vsub.f32 0.0, %v207
    %v264 = vsub.f32 0.0, %v208
    %v265 = vsub.f32 0.0, %v209
    %v266 = vsub.f32 0.0, %v210
    %v267 = vmul.f32 %v263, %v207
    %v268 = vmul.f32 %v264, %v208
    %v269 = vmul.f32 %v265, %v209
    %v270 = vmul.f32 %v266, %v210
    %v271 = vmul.f32 %v267, 1.442695
    %v272 = vpow.pop %v271
    %v273 = vmul.f32 %v268, 1.442695
    %v274 = vpow.pop %v273
    %v275 = vmul.f32 %v269, 1.442695
    %v276 = vpow.pop %v275
    %v277 = vmul.f32 %v270, 1.442695
    %v278 = vpow.pop %v277
    %v279 = vmul.f32 %v259, %v272
    %v280 = vmul.f32 %v260, %v274
    %v281 = vmul.f32 %v261, %v276
    %v282 = vmul.f32 %v262, %v278
    %v283 = vsub.f32 1.0, %v279
    %v284 = vsub.f32 1.0, %v280
    %v285 = vsub.f32 1.0, %v281
    %v286 = vsub.f32 1.0, %v282
    %vm287 = vcmp.lt.f32.partialorder %v203, 0.0
    %vm288 = vcmp.lt.f32.partialorder %v204, 0.0
    %vm289 = vcmp.lt.f32.partialorder %v205, 0.0
    %vm290 = vcmp.lt.f32.partialorder %v206, 0.0
    %v291 = vsub.f32 0.0, %v283
    %v292 = vsub.f32 0.0, %v284
    %v293 = vsub.f32 0.0, %v285
    %v294 = vsub.f32 0.0, %v286
    %v295 = vsel %vm287, %v291, %v283
    %v296 = vsel %vm288, %v292, %v284
    %v297 = vsel %vm289, %v293, %v285
    %v298 = vsel %vm290, %v294, %v286
    %v299 = vadd.f32 %v295, 1.0
    %v300 = vadd.f32 %v296, 1.0
    %v301 = vadd.f32 %v297, 1.0
    %v302 = vadd.f32 %v298, 1.0
    %v303 = vmul.f32 %v199, %v299
    %v304 = vmul.f32 %v200, %v300
    %v305 = vmul.f32 %v201, %v301
    %v306 = vmul.f32 %v202, %v302
    %v307 = vpack.c.bf16 %v304, %v303
    %v308 = vpack.c.bf16 %v306, %v305
    %v309 = vld [vmem:[#allocation7] sm:$0xf]
    %v310 = vld [vmem:[#allocation7 + $0x4] sm:$0xf]
    %v311 = vld [vmem:[#allocation7 + $0x8] sm:$0xf]
    %v312 = vld [vmem:[#allocation7 + $0xc] sm:$0xf]
    %v313 = vld [vmem:[#allocation7 + $0x10] sm:$0xf]
    %v314 = vld [vmem:[#allocation7 + $0x14] sm:$0xf]
    %v315 = vld [vmem:[#allocation7 + $0x18] sm:$0xf]
    %v316 = vld [vmem:[#allocation7 + $0x1c] sm:$0xf]
    %v317 = vld [vmem:[#allocation7 + $0x20] sm:$0xf]
    %v318 = vld [vmem:[#allocation7 + $0x24] sm:$0xf]
    %v319 = vld [vmem:[#allocation7 + $0x28] sm:$0xf]
    %v320 = vld [vmem:[#allocation7 + $0x2c] sm:$0xf]
    %v321 = vld [vmem:[#allocation7 + $0x30] sm:$0xf]
    %v322 = vld [vmem:[#allocation7 + $0x34] sm:$0xf]
    %v323 = vld [vmem:[#allocation7 + $0x38] sm:$0xf]
    %v324 = vld [vmem:[#allocation7 + $0x3c] sm:$0xf]
    %v325 = vld [vmem:[%s4] sm:$0x1]
    %v327 = vlaneseq
    %v328 = vshrl.u32 %v327, 7
    %v329 = vsub.s32 0, %v328
    %v330 = vrot.slane %v325, %v329
    %v348 = vunpack.c.l.b16 %v309
    %v349 = vunpack.c.l.b16 %v310
    %v350 = vunpack.c.l.b16 %v311
    %v351 = vunpack.c.l.b16 %v312
    %v352 = vunpack.c.l.b16 %v313
    %v353 = vunpack.c.l.b16 %v314
    %v354 = vunpack.c.l.b16 %v315
    %v355 = vunpack.c.l.b16 %v316
    %v356 = vunpack.c.l.b16 %v317
    %v357 = vunpack.c.l.b16 %v318
    %v358 = vunpack.c.l.b16 %v319
    %v359 = vunpack.c.l.b16 %v320
    %v360 = vunpack.c.l.b16 %v321
    %v361 = vunpack.c.l.b16 %v322
    %v362 = vunpack.c.l.b16 %v323
    %v363 = vunpack.c.l.b16 %v324
    %v364 = vpack.c.b16 %v349, %v348
    %v365 = vpack.c.b16 %v351, %v350
    %v366 = vpack.c.b16 %v353, %v352
    %v367 = vpack.c.b16 %v355, %v354
    %v368 = vpack.c.b16 %v357, %v356
    %v369 = vpack.c.b16 %v359, %v358
    %v370 = vpack.c.b16 %v361, %v360
    %v371 = vpack.c.b16 %v363, %v362
    %380 = vmatprep.subr.bf16.mxu0 0
    %381 = vmatpush1.bf16.msra.mxu0 %v371
    %382 = vmatprep.subr.bf16.mxu0 0
    %383 = vmatpush1.bf16.msra.mxu0 %v370
    %384 = vmatprep.subr.bf16.mxu0 0
    %385 = vmatpush1.bf16.msra.mxu0 %v369
    %386 = vmatprep.subr.bf16.mxu0 0
    %387 = vmatpush1.bf16.msra.mxu0 %v368
    %388 = vmatprep.subr.bf16.mxu0 0
    %389 = vmatpush1.bf16.msra.mxu0 %v367
    %390 = vmatprep.subr.bf16.mxu0 0
    %391 = vmatpush1.bf16.msra.mxu0 %v366
    %392 = vmatprep.subr.bf16.mxu0 0
    %393 = vmatpush1.bf16.msra.mxu0 %v365
    %394 = vmatprep.subr.bf16.mxu0 0
    %395 = vmatpush1.bf16.msra.mxu0 %v364
    %396 = vmatprep.subr.bf16.mxu0 0
    %397 = vmatpush2.bf16.msra.mxu0 0
    %398 = vmatprep.subr.bf16.mxu0 0
    %399 = vmatpush2.bf16.msra.mxu0 0
    %400 = vmatprep.subr.bf16.mxu0 0
    %401 = vmatpush2.bf16.msra.mxu0 0
    %402 = vmatprep.subr.bf16.mxu0 0
    %403 = vmatpush2.bf16.msra.mxu0 0
    %404 = vmatprep.subr.bf16.mxu0 0
    %405 = vmatpush2.bf16.msra.mxu0 0
    %406 = vmatprep.subr.bf16.mxu0 0
    %407 = vmatpush2.bf16.msra.mxu0 0
    %408 = vmatprep.subr.bf16.mxu0 0
    %409 = vmatpush2.bf16.msra.mxu0 0
    %410 = vmatprep.subr.bf16.mxu0 0
    %411 = vmatpush2.bf16.msra.mxu0 0
    %412 = vmatprep.mubr.bf16.mxu0 0
    %413 = vmatmul.mubr.bf16.gmra.mxu0 %v307
    %v414 = vpop.f32.mrf.mxu0
    %v415 = vadd.f32 %v330, %v414
    %v416 = vpop.f32.mrf.mxu0
    %v417 = vpop.f32.mrf.mxu0
    %v418 = vadd.f32 %v330, %v417
    %v419 = vpop.f32.mrf.mxu0
    %420 = vmatprep.mubr.bf16.mxu0 0
    %421 = vmatmul.mubr.bf16.gmra.mxu0 %v308
    %v422 = vpop.f32.mrf.mxu0
    %v423 = vadd.f32 %v330, %v422
    %v424 = vpop.f32.mrf.mxu0
    %v425 = vpop.f32.mrf.mxu0
    %v426 = vadd.f32 %v330, %v425
    %v427 = vpop.f32.mrf.mxu0
    %428 = vdwg.mxu0
    %429 = vst [vmem:[#allocation8] sm:$0xff] %v415
    %430 = vst [vmem:[#allocation8 + $0x8] sm:$0xff] %v418
    %431 = vst [vmem:[#allocation8 + $0x10] sm:$0xff] %v423
    %432 = vst [vmem:[#allocation8 + $0x18] sm:$0xff] %v426
    // Predicated region
    $region34: #{tpu_custom_call.1} parent=1 // pred_check
      _
    $region35: #{tpu_custom_call.1} parent=1 // pred_check_branch
      %434 = sbr.rel (0) target = $region37
    $region36: #{tpu_custom_call.1} parent=1 // pred_region
      %s436 = ssub.s32 512, 512
      %437 = vsyncadd [#allocation4], %s436
      %s438 = sshll.u32 [#allocation8], 4
      %s439 = int_to_ptr.vmem [resolvable:$true] %s438
      %444 = dma.vmem_to_hbm [thread:$0]  %s439, 512, %s5, [#allocation4], 128, 128, 8
    $region37: #{tpu_custom_call.1} parent=1 // pred_fallthru
      _
    // Predicated region
    $region38: #{tpu_custom_call.1} parent=1 // pred_check
      _
    $region39: #{tpu_custom_call.1} parent=1 // pred_check_branch
      %446 = sbr.rel (0) target = $region41
    $region40: #{tpu_custom_call.1} parent=1 // pred_region
      %447 = dma.done [#allocation4], 512
    $region41: #{tpu_custom_call.1} parent=1 // pred_fallthru
      _
    %448 = vsyncpa [#allocation3], 1
    %449 = vsyncpa [#allocation6], 1
    %450 = vsyncpa [#allocation4], 1

</llo_original>
